<compile_context>
chip_gen: v5e
topology: v5e:2x2
jax: 0.10.0
libtpu: 0.0.40
codegen_flags: <defaults>
</compile_context>

<pallas_src>
import jax
import jax.numpy as jnp
from jax.experimental import pallas as pl
from jax.experimental.pallas import tpu as pltpu

HIDDEN = 20        # PyTorch hidden_size
HIDDEN_PAD = 32    # padded hidden so 4 * HIDDEN_PAD == 128 lanes


def _lstm_kernel(x_ref, h0_ref, c0_ref, wih_t_ref, whh_t_ref, b_ref,
                 wout_ref, bout_ref,
                 out_ref, hout_ref, cout_ref):
    """x_ref: (T, B, I); h0/c0: (1, B, Hp); wih_t: (I, 4Hp); whh_t: (Hp, 4Hp);
    b: (1, 4Hp); wout: (1, Hp); bout: (1, 1).
    out_ref: (1, T, 1); hout/cout: (1, B, Hp)."""
    T, B, I = x_ref.shape
    Hp = h0_ref.shape[-1]

    # Recurrent state is loop-carried in vregs, not VMEM scratch.
    h = h0_ref[0].astype(jnp.float32)                       # (B, Hp)
    c = c0_ref[0].astype(jnp.float32)                       # (B, Hp)

    whh_t = whh_t_ref[...].astype(jnp.float32)              # (Hp, 4Hp)

    # Hoisted input projection + bias: one (T*B, I) @ (I, 4Hp) matmul for all
    # timesteps instead of T matmuls + T bias adds on the serial critical path.
    x_all = x_ref[...].astype(jnp.float32).reshape(T * B, I)
    xw = (jnp.dot(x_all, wih_t_ref[...].astype(jnp.float32),
                  preferred_element_type=jnp.float32)
          + b_ref[...].astype(jnp.float32))                 # (T*B, 4Hp)

    # TODO(synk): keeping W_hh resident in MXU staging regs via
    # pltpu.matmul_push_rhs/acc_lhs was not applied; the unrolled jnp.dot form
    # is kept for robustness.
    r_rows = []   # per-step hidden state of batch element 0, vreg-resident
    for t in range(T):   # fully unrolled: T is a static trip count
        gates = xw[t * B:(t + 1) * B] + jnp.dot(
            h, whh_t, preferred_element_type=jnp.float32)   # (B, 4Hp)
        i_g = jax.nn.sigmoid(gates[:, 0 * Hp:1 * Hp])
        f_g = jax.nn.sigmoid(gates[:, 1 * Hp:2 * Hp])
        g_g = jnp.tanh(gates[:, 2 * Hp:3 * Hp])
        o_g = jax.nn.sigmoid(gates[:, 3 * Hp:4 * Hp])
        c = f_g * c + i_g * g_g
        h = o_g * jnp.tanh(c)
        r_rows.append(h[0:1, :])                            # batch element 0

    # outputs = Linear(r_out[0, :]).unsqueeze(0) -> (1, T, 1)
    # MXU-free: VPU broadcast-multiply + lane reduce (padded wout lanes are 0).
    r0 = jnp.concatenate(r_rows, axis=0)                    # (T, Hp)
    wout_row = wout_ref[...].astype(jnp.float32)            # (1, Hp)
    proj = (jnp.sum(r0 * wout_row, axis=-1, keepdims=True)
            + bout_ref[...].astype(jnp.float32))            # (T, 1)
    out_ref[0] = proj.astype(out_ref.dtype)
    hout_ref[0] = h.astype(hout_ref.dtype)
    cout_ref[0] = c.astype(cout_ref.dtype)


def _pad_gate_blocks(w, hidden, hidden_pad):
    """Zero-pad a (4*hidden, ...) PyTorch LSTM parameter to (4*hidden_pad, ...)
    keeping the i/f/g/o gate ordering."""
    tail = w.shape[1:]
    w4 = w.reshape(4, hidden, *tail)
    pad = [(0, 0), (0, hidden_pad - hidden)] + [(0, 0)] * len(tail)
    return jnp.pad(w4, pad).reshape(4 * hidden_pad, *tail)


@jax.jit
def lstm_forward(x, h_state, c_state, params):
    """x: (B, T, I) float32 (batch_first); h_state/c_state: (1, B, H).
    Returns (outputs (1, T, 1), h_new (1, B, H), c_new (1, B, H))."""
    B, T, I = x.shape
    H = h_state.shape[-1]
    Hp = HIDDEN_PAD
    pad_h = Hp - H

    wih_p = _pad_gate_blocks(params["w_ih"], H, Hp)                    # (4Hp, I)
    whh_p = _pad_gate_blocks(params["w_hh"], H, Hp)                    # (4Hp, H)
    whh_p = jnp.pad(whh_p, ((0, 0), (0, pad_h)))                       # (4Hp, Hp)
    bias_p = _pad_gate_blocks(params["b_ih"] + params["b_hh"], H, Hp)  # (4Hp,)
    wout_p = jnp.pad(params["w_out"], ((0, 0), (0, pad_h)))            # (1, Hp)

    x_tbi = jnp.transpose(x, (1, 0, 2))                                # (T, B, I)
    h0 = jnp.pad(h_state, ((0, 0), (0, 0), (0, pad_h)))                # (1, B, Hp)
    c0 = jnp.pad(c_state, ((0, 0), (0, 0), (0, pad_h)))                # (1, B, Hp)

    out_shape = (
        jax.ShapeDtypeStruct((1, T, 1), x.dtype),     # outputs
        jax.ShapeDtypeStruct((1, B, Hp), x.dtype),    # h_state (padded)
        jax.ShapeDtypeStruct((1, B, Hp), x.dtype),    # c_state (padded)
    )
    vmem = pl.BlockSpec(memory_space=pltpu.MemorySpace.VMEM)
    out, h_new, c_new = pl.pallas_call(
        _lstm_kernel,
        out_shape=out_shape,
        in_specs=[vmem] * 8,
        out_specs=(vmem, vmem, vmem),
    )(x_tbi, h0, c0, wih_p.T, whh_p.T, bias_p.reshape(1, 4 * Hp),
      wout_p, params["b_out"].reshape(1, 1))

    return out, h_new[:, :, :H], c_new[:, :, :H]


def _init_params(key, input_size, hidden):
    # PyTorch default init: U(-1/sqrt(H), 1/sqrt(H)) for all LSTM & Linear params.
    k = 1.0 / jnp.sqrt(jnp.float32(hidden))
    keys = jax.random.split(key, 6)
    u = lambda kk, shape: jax.random.uniform(kk, shape, jnp.float32, -k, k)
    return {
        "w_ih": u(keys[0], (4 * hidden, input_size)),
        "w_hh": u(keys[1], (4 * hidden, hidden)),
        "b_ih": u(keys[2], (4 * hidden,)),
        "b_hh": u(keys[3], (4 * hidden,)),
        "w_out": u(keys[4], (1, hidden)),
        "b_out": u(keys[5], (1,)),
    }


def _reference(x, h0, c0, params):
    """Pure-JAX reference matching torch.nn.LSTM + Linear semantics."""
    H = h0.shape[-1]
    h, c = h0[0], c0[0]
    b = params["b_ih"] + params["b_hh"]
    outs = []
    for t in range(x.shape[1]):
        gates = x[:, t, :] @ params["w_ih"].T + h @ params["w_hh"].T + b
        i = jax.nn.sigmoid(gates[:, :H])
        f = jax.nn.sigmoid(gates[:, H:2 * H])
        g = jnp.tanh(gates[:, 2 * H:3 * H])
        o = jax.nn.sigmoid(gates[:, 3 * H:])
        c = f * c + i * g
        h = o * jnp.tanh(c)
        outs.append(h)
    r = jnp.stack(outs, axis=1)                                  # (B, T, H)
    out = (r[0] @ params["w_out"].T + params["b_out"])[None]     # (1, T, 1)
    return out, h[None], c[None]


if __name__ == "__main__":
    INPUT_SIZE = 1
    SEQ = 8
    BATCH = 1

    key = jax.random.PRNGKey(0)
    k_p, k_x, k_h, k_c = jax.random.split(key, 4)

    params = _init_params(k_p, INPUT_SIZE, HIDDEN)
    x = jax.random.normal(k_x, (BATCH, SEQ, INPUT_SIZE), jnp.float32)
    h_state = jax.random.uniform(k_h, (1, BATCH, HIDDEN), jnp.float32)
    c_state = jax.random.uniform(k_c, (1, BATCH, HIDDEN), jnp.float32)

    outputs, h_new, c_new = lstm_forward(x, h_state, c_state, params)
    jax.block_until_ready((outputs, h_new, c_new))

    ref_out, ref_h, ref_c = _reference(x, h_state, c_state, params)
    assert outputs.shape == (1, SEQ, 1)
    assert h_new.shape == (1, BATCH, HIDDEN) and c_new.shape == (1, BATCH, HIDDEN)
    assert jnp.allclose(outputs, ref_out, atol=1e-5, rtol=1e-5)
    assert jnp.allclose(h_new, ref_h, atol=1e-5, rtol=1e-5)
    assert jnp.allclose(c_new, ref_c, atol=1e-5, rtol=1e-5)

    print("KERNEL_OK")
</pallas_src>

<mosaic_0001>
module attributes {stable_mosaic.version = 11 : i64} {
  func.func @_lstm_kernel(%arg0: memref<8x1x1xf32, #tpu.memory_space<vmem>>, %arg1: memref<1x1x32xf32, #tpu.memory_space<vmem>>, %arg2: memref<1x1x32xf32, #tpu.memory_space<vmem>>, %arg3: memref<1x128xf32, #tpu.memory_space<vmem>>, %arg4: memref<32x128xf32, #tpu.memory_space<vmem>>, %arg5: memref<1x128xf32, #tpu.memory_space<vmem>>, %arg6: memref<1x32xf32, #tpu.memory_space<vmem>>, %arg7: memref<1x1xf32, #tpu.memory_space<vmem>>, %arg8: memref<1x8x1xf32, #tpu.memory_space<vmem>>, %arg9: memref<1x1x32xf32, #tpu.memory_space<vmem>>, %arg10: memref<1x1x32xf32, #tpu.memory_space<vmem>>) attributes {dimension_semantics = [], scalar_prefetch = 0 : i64, scratch_operands = 0 : i64, tpu.core_type = #tpu.core_type<tc>} {
    %c0 = arith.constant 0 : index
    %c0_0 = arith.constant 0 : index
    %c0_1 = arith.constant 0 : index
    %0 = vector.load %arg1[%c0, %c0_0, %c0_1] : memref<1x1x32xf32, #tpu.memory_space<vmem>>, vector<1x1x32xf32>
    %1 = vector.shape_cast %0 : vector<1x1x32xf32> to vector<1x32xf32>
    %c0_2 = arith.constant 0 : index
    %c0_3 = arith.constant 0 : index
    %c0_4 = arith.constant 0 : index
    %2 = vector.load %arg2[%c0_2, %c0_3, %c0_4] : memref<1x1x32xf32, #tpu.memory_space<vmem>>, vector<1x1x32xf32>
    %3 = vector.shape_cast %2 : vector<1x1x32xf32> to vector<1x32xf32>
    %c0_5 = arith.constant 0 : index
    %c0_6 = arith.constant 0 : index
    %4 = vector.load %arg4[%c0_5, %c0_6] : memref<32x128xf32, #tpu.memory_space<vmem>>, vector<32x128xf32>
    %c0_7 = arith.constant 0 : index
    %c0_8 = arith.constant 0 : index
    %c0_9 = arith.constant 0 : index
    %5 = vector.load %arg0[%c0_7, %c0_8, %c0_9] : memref<8x1x1xf32, #tpu.memory_space<vmem>>, vector<8x1x1xf32>
    %6 = vector.shape_cast %5 : vector<8x1x1xf32> to vector<8x1xf32>
    %c0_10 = arith.constant 0 : index
    %c0_11 = arith.constant 0 : index
    %7 = vector.load %arg3[%c0_10, %c0_11] : memref<1x128xf32, #tpu.memory_space<vmem>>, vector<1x128xf32>
    %cst = arith.constant dense<0.000000e+00> : vector<8x128xf32>
    %8 = tpu.matmul %6, %7, %cst {dimension_numbers = #tpu.dot_dimension_numbers<[1], [0], [0], [1], [0, 0, 1, 1], [], []>} : vector<8x1xf32>, vector<1x128xf32>, vector<8x128xf32> -> vector<8x128xf32>
    %c0_12 = arith.constant 0 : index
    %c0_13 = arith.constant 0 : index
    %9 = vector.load %arg5[%c0_12, %c0_13] : memref<1x128xf32, #tpu.memory_space<vmem>>, vector<1x128xf32>
    %10 = vector.broadcast %9 : vector<1x128xf32> to vector<8x128xf32>
    %11 = arith.addf %8, %10 : vector<8x128xf32>
    %12 = vector.extract_strided_slice %11 {offsets = [0, 0], sizes = [1, 128], strides = [1, 1]} : vector<8x128xf32> to vector<1x128xf32>
    %cst_14 = arith.constant dense<0.000000e+00> : vector<1x128xf32>
    %13 = tpu.matmul %1, %4, %cst_14 {dimension_numbers = #tpu.dot_dimension_numbers<[1], [0], [0], [1], [0, 0, 1, 1], [], []>} : vector<1x32xf32>, vector<32x128xf32>, vector<1x128xf32> -> vector<1x128xf32>
    %14 = arith.addf %12, %13 : vector<1x128xf32>
    %15 = vector.extract_strided_slice %14 {offsets = [0, 0], sizes = [1, 32], strides = [1, 1]} : vector<1x128xf32> to vector<1x32xf32>
    %16 = arith.negf %15 : vector<1x32xf32>
    %17 = math.exp %16 : vector<1x32xf32>
    %cst_15 = arith.constant 1.000000e+00 : f32
    %18 = vector.broadcast %cst_15 : f32 to vector<1x32xf32>
    %19 = arith.addf %18, %17 : vector<1x32xf32>
    %20 = arith.divf %18, %19 : vector<1x32xf32>
    %21 = vector.extract_strided_slice %14 {offsets = [0, 32], sizes = [1, 32], strides = [1, 1]} : vector<1x128xf32> to vector<1x32xf32>
    %22 = arith.negf %21 : vector<1x32xf32>
    %23 = math.exp %22 : vector<1x32xf32>
    %cst_16 = arith.constant 1.000000e+00 : f32
    %24 = vector.broadcast %cst_16 : f32 to vector<1x32xf32>
    %25 = arith.addf %24, %23 : vector<1x32xf32>
    %26 = arith.divf %24, %25 : vector<1x32xf32>
    %27 = vector.extract_strided_slice %14 {offsets = [0, 64], sizes = [1, 32], strides = [1, 1]} : vector<1x128xf32> to vector<1x32xf32>
    %28 = math.tanh %27 : vector<1x32xf32>
    %29 = vector.extract_strided_slice %14 {offsets = [0, 96], sizes = [1, 32], strides = [1, 1]} : vector<1x128xf32> to vector<1x32xf32>
    %30 = arith.negf %29 : vector<1x32xf32>
    %31 = math.exp %30 : vector<1x32xf32>
    %cst_17 = arith.constant 1.000000e+00 : f32
    %32 = vector.broadcast %cst_17 : f32 to vector<1x32xf32>
    %33 = arith.addf %32, %31 : vector<1x32xf32>
    %34 = arith.divf %32, %33 : vector<1x32xf32>
    %35 = arith.mulf %26, %3 : vector<1x32xf32>
    %36 = arith.mulf %20, %28 : vector<1x32xf32>
    %37 = arith.addf %35, %36 : vector<1x32xf32>
    %38 = math.tanh %37 : vector<1x32xf32>
    %39 = arith.mulf %34, %38 : vector<1x32xf32>
    %40 = vector.extract_strided_slice %11 {offsets = [1, 0], sizes = [1, 128], strides = [1, 1]} : vector<8x128xf32> to vector<1x128xf32>
    %cst_18 = arith.constant dense<0.000000e+00> : vector<1x128xf32>
    %41 = tpu.matmul %39, %4, %cst_18 {dimension_numbers = #tpu.dot_dimension_numbers<[1], [0], [0], [1], [0, 0, 1, 1], [], []>} : vector<1x32xf32>, vector<32x128xf32>, vector<1x128xf32> -> vector<1x128xf32>
    %42 = arith.addf %40, %41 : vector<1x128xf32>
    %43 = vector.extract_strided_slice %42 {offsets = [0, 0], sizes = [1, 32], strides = [1, 1]} : vector<1x128xf32> to vector<1x32xf32>
    %44 = arith.negf %43 : vector<1x32xf32>
    %45 = math.exp %44 : vector<1x32xf32>
    %cst_19 = arith.constant 1.000000e+00 : f32
    %46 = vector.broadcast %cst_19 : f32 to vector<1x32xf32>
    %47 = arith.addf %46, %45 : vector<1x32xf32>
    %48 = arith.divf %46, %47 : vector<1x32xf32>
    %49 = vector.extract_strided_slice %42 {offsets = [0, 32], sizes = [1, 32], strides = [1, 1]} : vector<1x128xf32> to vector<1x32xf32>
    %50 = arith.negf %49 : vector<1x32xf32>
    %51 = math.exp %50 : vector<1x32xf32>
    %cst_20 = arith.constant 1.000000e+00 : f32
    %52 = vector.broadcast %cst_20 : f32 to vector<1x32xf32>
    %53 = arith.addf %52, %51 : vector<1x32xf32>
    %54 = arith.divf %52, %53 : vector<1x32xf32>
    %55 = vector.extract_strided_slice %42 {offsets = [0, 64], sizes = [1, 32], strides = [1, 1]} : vector<1x128xf32> to vector<1x32xf32>
    %56 = math.tanh %55 : vector<1x32xf32>
    %57 = vector.extract_strided_slice %42 {offsets = [0, 96], sizes = [1, 32], strides = [1, 1]} : vector<1x128xf32> to vector<1x32xf32>
    %58 = arith.negf %57 : vector<1x32xf32>
    %59 = math.exp %58 : vector<1x32xf32>
    %cst_21 = arith.constant 1.000000e+00 : f32
    %60 = vector.broadcast %cst_21 : f32 to vector<1x32xf32>
    %61 = arith.addf %60, %59 : vector<1x32xf32>
    %62 = arith.divf %60, %61 : vector<1x32xf32>
    %63 = arith.mulf %54, %37 : vector<1x32xf32>
    %64 = arith.mulf %48, %56 : vector<1x32xf32>
    %65 = arith.addf %63, %64 : vector<1x32xf32>
    %66 = math.tanh %65 : vector<1x32xf32>
    %67 = arith.mulf %62, %66 : vector<1x32xf32>
    %68 = vector.extract_strided_slice %11 {offsets = [2, 0], sizes = [1, 128], strides = [1, 1]} : vector<8x128xf32> to vector<1x128xf32>
    %cst_22 = arith.constant dense<0.000000e+00> : vector<1x128xf32>
    %69 = tpu.matmul %67, %4, %cst_22 {dimension_numbers = #tpu.dot_dimension_numbers<[1], [0], [0], [1], [0, 0, 1, 1], [], []>} : vector<1x32xf32>, vector<32x128xf32>, vector<1x128xf32> -> vector<1x128xf32>
    %70 = arith.addf %68, %69 : vector<1x128xf32>
    %71 = vector.extract_strided_slice %70 {offsets = [0, 0], sizes = [1, 32], strides = [1, 1]} : vector<1x128xf32> to vector<1x32xf32>
    %72 = arith.negf %71 : vector<1x32xf32>
    %73 = math.exp %72 : vector<1x32xf32>
    %cst_23 = arith.constant 1.000000e+00 : f32
    %74 = vector.broadcast %cst_23 : f32 to vector<1x32xf32>
    %75 = arith.addf %74, %73 : vector<1x32xf32>
    %76 = arith.divf %74, %75 : vector<1x32xf32>
    %77 = vector.extract_strided_slice %70 {offsets = [0, 32], sizes = [1, 32], strides = [1, 1]} : vector<1x128xf32> to vector<1x32xf32>
    %78 = arith.negf %77 : vector<1x32xf32>
    %79 = math.exp %78 : vector<1x32xf32>
    %cst_24 = arith.constant 1.000000e+00 : f32
    %80 = vector.broadcast %cst_24 : f32 to vector<1x32xf32>
    %81 = arith.addf %80, %79 : vector<1x32xf32>
    %82 = arith.divf %80, %81 : vector<1x32xf32>
    %83 = vector.extract_strided_slice %70 {offsets = [0, 64], sizes = [1, 32], strides = [1, 1]} : vector<1x128xf32> to vector<1x32xf32>
    %84 = math.tanh %83 : vector<1x32xf32>
    %85 = vector.extract_strided_slice %70 {offsets = [0, 96], sizes = [1, 32], strides = [1, 1]} : vector<1x128xf32> to vector<1x32xf32>
    %86 = arith.negf %85 : vector<1x32xf32>
    %87 = math.exp %86 : vector<1x32xf32>
    %cst_25 = arith.constant 1.000000e+00 : f32
    %88 = vector.broadcast %cst_25 : f32 to vector<1x32xf32>
    %89 = arith.addf %88, %87 : vector<1x32xf32>
    %90 = arith.divf %88, %89 : vector<1x32xf32>
    %91 = arith.mulf %82, %65 : vector<1x32xf32>
    %92 = arith.mulf %76, %84 : vector<1x32xf32>
    %93 = arith.addf %91, %92 : vector<1x32xf32>
    %94 = math.tanh %93 : vector<1x32xf32>
    %95 = arith.mulf %90, %94 : vector<1x32xf32>
    %96 = vector.extract_strided_slice %11 {offsets = [3, 0], sizes = [1, 128], strides = [1, 1]} : vector<8x128xf32> to vector<1x128xf32>
    %cst_26 = arith.constant dense<0.000000e+00> : vector<1x128xf32>
    %97 = tpu.matmul %95, %4, %cst_26 {dimension_numbers = #tpu.dot_dimension_numbers<[1], [0], [0], [1], [0, 0, 1, 1], [], []>} : vector<1x32xf32>, vector<32x128xf32>, vector<1x128xf32> -> vector<1x128xf32>
    %98 = arith.addf %96, %97 : vector<1x128xf32>
    %99 = vector.extract_strided_slice %98 {offsets = [0, 0], sizes = [1, 32], strides = [1, 1]} : vector<1x128xf32> to vector<1x32xf32>
    %100 = arith.negf %99 : vector<1x32xf32>
    %101 = math.exp %100 : vector<1x32xf32>
    %cst_27 = arith.constant 1.000000e+00 : f32
    %102 = vector.broadcast %cst_27 : f32 to vector<1x32xf32>
    %103 = arith.addf %102, %101 : vector<1x32xf32>
    %104 = arith.divf %102, %103 : vector<1x32xf32>
    %105 = vector.extract_strided_slice %98 {offsets = [0, 32], sizes = [1, 32], strides = [1, 1]} : vector<1x128xf32> to vector<1x32xf32>
    %106 = arith.negf %105 : vector<1x32xf32>
    %107 = math.exp %106 : vector<1x32xf32>
    %cst_28 = arith.constant 1.000000e+00 : f32
    %108 = vector.broadcast %cst_28 : f32 to vector<1x32xf32>
    %109 = arith.addf %108, %107 : vector<1x32xf32>
    %110 = arith.divf %108, %109 : vector<1x32xf32>
    %111 = vector.extract_strided_slice %98 {offsets = [0, 64], sizes = [1, 32], strides = [1, 1]} : vector<1x128xf32> to vector<1x32xf32>
    %112 = math.tanh %111 : vector<1x32xf32>
    %113 = vector.extract_strided_slice %98 {offsets = [0, 96], sizes = [1, 32], strides = [1, 1]} : vector<1x128xf32> to vector<1x32xf32>
    %114 = arith.negf %113 : vector<1x32xf32>
    %115 = math.exp %114 : vector<1x32xf32>
    %cst_29 = arith.constant 1.000000e+00 : f32
    %116 = vector.broadcast %cst_29 : f32 to vector<1x32xf32>
    %117 = arith.addf %116, %115 : vector<1x32xf32>
    %118 = arith.divf %116, %117 : vector<1x32xf32>
    %119 = arith.mulf %110, %93 : vector<1x32xf32>
    %120 = arith.mulf %104, %112 : vector<1x32xf32>
    %121 = arith.addf %119, %120 : vector<1x32xf32>
    %122 = math.tanh %121 : vector<1x32xf32>
    %123 = arith.mulf %118, %122 : vector<1x32xf32>
    %124 = vector.extract_strided_slice %11 {offsets = [4, 0], sizes = [1, 128], strides = [1, 1]} : vector<8x128xf32> to vector<1x128xf32>
    %cst_30 = arith.constant dense<0.000000e+00> : vector<1x128xf32>
    %125 = tpu.matmul %123, %4, %cst_30 {dimension_numbers = #tpu.dot_dimension_numbers<[1], [0], [0], [1], [0, 0, 1, 1], [], []>} : vector<1x32xf32>, vector<32x128xf32>, vector<1x128xf32> -> vector<1x128xf32>
    %126 = arith.addf %124, %125 : vector<1x128xf32>
    %127 = vector.extract_strided_slice %126 {offsets = [0, 0], sizes = [1, 32], strides = [1, 1]} : vector<1x128xf32> to vector<1x32xf32>
    %128 = arith.negf %127 : vector<1x32xf32>
    %129 = math.exp %128 : vector<1x32xf32>
    %cst_31 = arith.constant 1.000000e+00 : f32
    %130 = vector.broadcast %cst_31 : f32 to vector<1x32xf32>
    %131 = arith.addf %130, %129 : vector<1x32xf32>
    %132 = arith.divf %130, %131 : vector<1x32xf32>
    %133 = vector.extract_strided_slice %126 {offsets = [0, 32], sizes = [1, 32], strides = [1, 1]} : vector<1x128xf32> to vector<1x32xf32>
    %134 = arith.negf %133 : vector<1x32xf32>
    %135 = math.exp %134 : vector<1x32xf32>
    %cst_32 = arith.constant 1.000000e+00 : f32
    %136 = vector.broadcast %cst_32 : f32 to vector<1x32xf32>
    %137 = arith.addf %136, %135 : vector<1x32xf32>
    %138 = arith.divf %136, %137 : vector<1x32xf32>
    %139 = vector.extract_strided_slice %126 {offsets = [0, 64], sizes = [1, 32], strides = [1, 1]} : vector<1x128xf32> to vector<1x32xf32>
    %140 = math.tanh %139 : vector<1x32xf32>
    %141 = vector.extract_strided_slice %126 {offsets = [0, 96], sizes = [1, 32], strides = [1, 1]} : vector<1x128xf32> to vector<1x32xf32>
    %142 = arith.negf %141 : vector<1x32xf32>
    %143 = math.exp %142 : vector<1x32xf32>
    %cst_33 = arith.constant 1.000000e+00 : f32
    %144 = vector.broadcast %cst_33 : f32 to vector<1x32xf32>
    %145 = arith.addf %144, %143 : vector<1x32xf32>
    %146 = arith.divf %144, %145 : vector<1x32xf32>
    %147 = arith.mulf %138, %121 : vector<1x32xf32>
    %148 = arith.mulf %132, %140 : vector<1x32xf32>
    %149 = arith.addf %147, %148 : vector<1x32xf32>
    %150 = math.tanh %149 : vector<1x32xf32>
    %151 = arith.mulf %146, %150 : vector<1x32xf32>
    %152 = vector.extract_strided_slice %11 {offsets = [5, 0], sizes = [1, 128], strides = [1, 1]} : vector<8x128xf32> to vector<1x128xf32>
    %cst_34 = arith.constant dense<0.000000e+00> : vector<1x128xf32>
    %153 = tpu.matmul %151, %4, %cst_34 {dimension_numbers = #tpu.dot_dimension_numbers<[1], [0], [0], [1], [0, 0, 1, 1], [], []>} : vector<1x32xf32>, vector<32x128xf32>, vector<1x128xf32> -> vector<1x128xf32>
    %154 = arith.addf %152, %153 : vector<1x128xf32>
    %155 = vector.extract_strided_slice %154 {offsets = [0, 0], sizes = [1, 32], strides = [1, 1]} : vector<1x128xf32> to vector<1x32xf32>
    %156 = arith.negf %155 : vector<1x32xf32>
    %157 = math.exp %156 : vector<1x32xf32>
    %cst_35 = arith.constant 1.000000e+00 : f32
    %158 = vector.broadcast %cst_35 : f32 to vector<1x32xf32>
    %159 = arith.addf %158, %157 : vector<1x32xf32>
    %160 = arith.divf %158, %159 : vector<1x32xf32>
    %161 = vector.extract_strided_slice %154 {offsets = [0, 32], sizes = [1, 32], strides = [1, 1]} : vector<1x128xf32> to vector<1x32xf32>
    %162 = arith.negf %161 : vector<1x32xf32>
    %163 = math.exp %162 : vector<1x32xf32>
    %cst_36 = arith.constant 1.000000e+00 : f32
    %164 = vector.broadcast %cst_36 : f32 to vector<1x32xf32>
    %165 = arith.addf %164, %163 : vector<1x32xf32>
    %166 = arith.divf %164, %165 : vector<1x32xf32>
    %167 = vector.extract_strided_slice %154 {offsets = [0, 64], sizes = [1, 32], strides = [1, 1]} : vector<1x128xf32> to vector<1x32xf32>
    %168 = math.tanh %167 : vector<1x32xf32>
    %169 = vector.extract_strided_slice %154 {offsets = [0, 96], sizes = [1, 32], strides = [1, 1]} : vector<1x128xf32> to vector<1x32xf32>
    %170 = arith.negf %169 : vector<1x32xf32>
    %171 = math.exp %170 : vector<1x32xf32>
    %cst_37 = arith.constant 1.000000e+00 : f32
    %172 = vector.broadcast %cst_37 : f32 to vector<1x32xf32>
    %173 = arith.addf %172, %171 : vector<1x32xf32>
    %174 = arith.divf %172, %173 : vector<1x32xf32>
    %175 = arith.mulf %166, %149 : vector<1x32xf32>
    %176 = arith.mulf %160, %168 : vector<1x32xf32>
    %177 = arith.addf %175, %176 : vector<1x32xf32>
    %178 = math.tanh %177 : vector<1x32xf32>
    %179 = arith.mulf %174, %178 : vector<1x32xf32>
    %180 = vector.extract_strided_slice %11 {offsets = [6, 0], sizes = [1, 128], strides = [1, 1]} : vector<8x128xf32> to vector<1x128xf32>
    %cst_38 = arith.constant dense<0.000000e+00> : vector<1x128xf32>
    %181 = tpu.matmul %179, %4, %cst_38 {dimension_numbers = #tpu.dot_dimension_numbers<[1], [0], [0], [1], [0, 0, 1, 1], [], []>} : vector<1x32xf32>, vector<32x128xf32>, vector<1x128xf32> -> vector<1x128xf32>
    %182 = arith.addf %180, %181 : vector<1x128xf32>
    %183 = vector.extract_strided_slice %182 {offsets = [0, 0], sizes = [1, 32], strides = [1, 1]} : vector<1x128xf32> to vector<1x32xf32>
    %184 = arith.negf %183 : vector<1x32xf32>
    %185 = math.exp %184 : vector<1x32xf32>
    %cst_39 = arith.constant 1.000000e+00 : f32
    %186 = vector.broadcast %cst_39 : f32 to vector<1x32xf32>
    %187 = arith.addf %186, %185 : vector<1x32xf32>
    %188 = arith.divf %186, %187 : vector<1x32xf32>
    %189 = vector.extract_strided_slice %182 {offsets = [0, 32], sizes = [1, 32], strides = [1, 1]} : vector<1x128xf32> to vector<1x32xf32>
    %190 = arith.negf %189 : vector<1x32xf32>
    %191 = math.exp %190 : vector<1x32xf32>
    %cst_40 = arith.constant 1.000000e+00 : f32
    %192 = vector.broadcast %cst_40 : f32 to vector<1x32xf32>
    %193 = arith.addf %192, %191 : vector<1x32xf32>
    %194 = arith.divf %192, %193 : vector<1x32xf32>
    %195 = vector.extract_strided_slice %182 {offsets = [0, 64], sizes = [1, 32], strides = [1, 1]} : vector<1x128xf32> to vector<1x32xf32>
    %196 = math.tanh %195 : vector<1x32xf32>
    %197 = vector.extract_strided_slice %182 {offsets = [0, 96], sizes = [1, 32], strides = [1, 1]} : vector<1x128xf32> to vector<1x32xf32>
    %198 = arith.negf %197 : vector<1x32xf32>
    %199 = math.exp %198 : vector<1x32xf32>
    %cst_41 = arith.constant 1.000000e+00 : f32
    %200 = vector.broadcast %cst_41 : f32 to vector<1x32xf32>
    %201 = arith.addf %200, %199 : vector<1x32xf32>
    %202 = arith.divf %200, %201 : vector<1x32xf32>
    %203 = arith.mulf %194, %177 : vector<1x32xf32>
    %204 = arith.mulf %188, %196 : vector<1x32xf32>
    %205 = arith.addf %203, %204 : vector<1x32xf32>
    %206 = math.tanh %205 : vector<1x32xf32>
    %207 = arith.mulf %202, %206 : vector<1x32xf32>
    %208 = vector.extract_strided_slice %11 {offsets = [7, 0], sizes = [1, 128], strides = [1, 1]} : vector<8x128xf32> to vector<1x128xf32>
    %cst_42 = arith.constant dense<0.000000e+00> : vector<1x128xf32>
    %209 = tpu.matmul %207, %4, %cst_42 {dimension_numbers = #tpu.dot_dimension_numbers<[1], [0], [0], [1], [0, 0, 1, 1], [], []>} : vector<1x32xf32>, vector<32x128xf32>, vector<1x128xf32> -> vector<1x128xf32>
    %210 = arith.addf %208, %209 : vector<1x128xf32>
    %211 = vector.extract_strided_slice %210 {offsets = [0, 0], sizes = [1, 32], strides = [1, 1]} : vector<1x128xf32> to vector<1x32xf32>
    %212 = arith.negf %211 : vector<1x32xf32>
    %213 = math.exp %212 : vector<1x32xf32>
    %cst_43 = arith.constant 1.000000e+00 : f32
    %214 = vector.broadcast %cst_43 : f32 to vector<1x32xf32>
    %215 = arith.addf %214, %213 : vector<1x32xf32>
    %216 = arith.divf %214, %215 : vector<1x32xf32>
    %217 = vector.extract_strided_slice %210 {offsets = [0, 32], sizes = [1, 32], strides = [1, 1]} : vector<1x128xf32> to vector<1x32xf32>
    %218 = arith.negf %217 : vector<1x32xf32>
    %219 = math.exp %218 : vector<1x32xf32>
    %cst_44 = arith.constant 1.000000e+00 : f32
    %220 = vector.broadcast %cst_44 : f32 to vector<1x32xf32>
    %221 = arith.addf %220, %219 : vector<1x32xf32>
    %222 = arith.divf %220, %221 : vector<1x32xf32>
    %223 = vector.extract_strided_slice %210 {offsets = [0, 64], sizes = [1, 32], strides = [1, 1]} : vector<1x128xf32> to vector<1x32xf32>
    %224 = math.tanh %223 : vector<1x32xf32>
    %225 = vector.extract_strided_slice %210 {offsets = [0, 96], sizes = [1, 32], strides = [1, 1]} : vector<1x128xf32> to vector<1x32xf32>
    %226 = arith.negf %225 : vector<1x32xf32>
    %227 = math.exp %226 : vector<1x32xf32>
    %cst_45 = arith.constant 1.000000e+00 : f32
    %228 = vector.broadcast %cst_45 : f32 to vector<1x32xf32>
    %229 = arith.addf %228, %227 : vector<1x32xf32>
    %230 = arith.divf %228, %229 : vector<1x32xf32>
    %231 = arith.mulf %222, %205 : vector<1x32xf32>
    %232 = arith.mulf %216, %224 : vector<1x32xf32>
    %233 = arith.addf %231, %232 : vector<1x32xf32>
    %234 = math.tanh %233 : vector<1x32xf32>
    %235 = arith.mulf %230, %234 : vector<1x32xf32>
    %236 = tpu.concatenate %39, %67, %95, %123, %151, %179, %207, %235 in 0 : vector<1x32xf32>, vector<1x32xf32>, vector<1x32xf32>, vector<1x32xf32>, vector<1x32xf32>, vector<1x32xf32>, vector<1x32xf32>, vector<1x32xf32> -> vector<8x32xf32>
    %c0_46 = arith.constant 0 : index
    %c0_47 = arith.constant 0 : index
    %237 = vector.load %arg6[%c0_46, %c0_47] : memref<1x32xf32, #tpu.memory_space<vmem>>, vector<1x32xf32>
    %238 = vector.broadcast %237 : vector<1x32xf32> to vector<8x32xf32>
    %239 = arith.mulf %236, %238 : vector<8x32xf32>
    %cst_48 = arith.constant dense<0.000000e+00> : vector<8xf32>
    %240 = vector.multi_reduction <add>, %239, %cst_48 [1] : vector<8x32xf32> to vector<8xf32>
    %241 = vector.shape_cast %240 : vector<8xf32> to vector<8x1xf32>
    %c0_49 = arith.constant 0 : index
    %c0_50 = arith.constant 0 : index
    %242 = vector.load %arg7[%c0_49, %c0_50] : memref<1x1xf32, #tpu.memory_space<vmem>>, vector<1x1xf32>
    %243 = vector.broadcast %242 : vector<1x1xf32> to vector<8x1xf32>
    %244 = arith.addf %241, %243 : vector<8x1xf32>
    %c0_51 = arith.constant 0 : index
    %c0_52 = arith.constant 0 : index
    %c0_53 = arith.constant 0 : index
    %245 = vector.load %arg8[%c0_51, %c0_52, %c0_53] : memref<1x8x1xf32, #tpu.memory_space<vmem>>, vector<1x8x1xf32>
    %246 = vector.shape_cast %245 : vector<1x8x1xf32> to vector<8x1xf32>
    %247 = vector.shape_cast %244 : vector<8x1xf32> to vector<1x8x1xf32>
    tpu.vector_store %arg8[%c0_51, %c0_52, %c0_53], %247 {strides = array<i32>} : memref<1x8x1xf32, #tpu.memory_space<vmem>>, vector<1x8x1xf32>,
    %c0_54 = arith.constant 0 : index
    %c0_55 = arith.constant 0 : index
    %c0_56 = arith.constant 0 : index
    %248 = vector.load %arg9[%c0_54, %c0_55, %c0_56] : memref<1x1x32xf32, #tpu.memory_space<vmem>>, vector<1x1x32xf32>
    %249 = vector.shape_cast %248 : vector<1x1x32xf32> to vector<1x32xf32>
    %250 = vector.shape_cast %235 : vector<1x32xf32> to vector<1x1x32xf32>
    tpu.vector_store %arg9[%c0_54, %c0_55, %c0_56], %250 {strides = array<i32>} : memref<1x1x32xf32, #tpu.memory_space<vmem>>, vector<1x1x32xf32>,
    %c0_57 = arith.constant 0 : index
    %c0_58 = arith.constant 0 : index
    %c0_59 = arith.constant 0 : index
    %251 = vector.load %arg10[%c0_57, %c0_58, %c0_59] : memref<1x1x32xf32, #tpu.memory_space<vmem>>, vector<1x1x32xf32>
    %252 = vector.shape_cast %251 : vector<1x1x32xf32> to vector<1x32xf32>
    %253 = vector.shape_cast %233 : vector<1x32xf32> to vector<1x1x32xf32>
    tpu.vector_store %arg10[%c0_57, %c0_58, %c0_59], %253 {strides = array<i32>} : memref<1x1x32xf32, #tpu.memory_space<vmem>>, vector<1x1x32xf32>,
    return
  }
}

</mosaic_0001>

<llo_original>
// kernel: lstm_forward.1
$region0: #{lstm_forward.1}
  #allocation0 [shape = 'u32[]', space=smem, size = 0x4, offset = 0x4, fixed_abs, tag = 'smem constant byte address 0x4 - core index']
  #allocation1 [shape = 'u32[72,128]{1,0:T(1,128)}', space=vmem, size = 0x9000, scoped, tag = 'internal scratch']
  #allocation2 [shape = 'f32[1,1]{1,0:T(1,128)S(1)}', space=vmem, size = 0x200, scoped, tag = 'scoped memory for lstm_forward.1']
  %s0 = inlined_call_operand.vmem [shape: f32[8,1,1], index: 0, kind: input, shape index: {}]
  %s1 = inlined_call_operand.vmem [shape: f32[1,1,32], index: 1, kind: input, shape index: {}]
  %s2 = inlined_call_operand.vmem [shape: f32[1,1,32], index: 2, kind: input, shape index: {}]
  %s3 = inlined_call_operand.vmem [shape: f32[1,128], index: 3, kind: input, shape index: {}]
  %s4 = inlined_call_operand.vmem [shape: f32[32,128], index: 4, kind: input, shape index: {}]
  %s5 = inlined_call_operand.vmem [shape: f32[1,128], index: 5, kind: input, shape index: {}]
  %s6 = inlined_call_operand.vmem [shape: f32[1,32], index: 6, kind: input, shape index: {}]
  %s7 = inlined_call_operand.<no memory space> [shape: f32[1,1], index: 7, kind: input, shape index: {}]
  %s8 = inlined_call_operand.vmem [shape: f32[1,8,1], index: 8, kind: output, shape index: {0}]
  %s9 = inlined_call_operand.hbm [shape: f32[1,1,32], index: 9, kind: output, shape index: {1}]
  %s10 = inlined_call_operand.hbm [shape: f32[1,1,32], index: 10, kind: output, shape index: {2}]
  %11 = xla_tuple %s8, %s9, %s10
  %s12 = sld [smem:[#allocation0]]
  $region58: #{lstm_forward.1} parent=0
    _
  %s14 = ssub.s32 1, %s12
  %s15 = scalar_select 0, %s14, %s12
  %v16 = vstv %s7
  %17 = vst [vmem:[#allocation2] sm:$0x1] %v16
  $region1: #{lstm_forward.1} parent=0
    #allocation3 [shape = 'u8[512]{0}', space=vmem, size = 0x400, scoped, tag = 'output window, operand 1, single buffered']
    #allocation4 [shape = 's32[1]{0}', space=sflag, size = 0x4, scoped, tag = 'scoped memory for lstm_forward.1']
    #allocation5 [shape = 'u8[512]{0}', space=vmem, size = 0x400, scoped, tag = 'output window, operand 2, single buffered']
    #allocation6 [shape = 's32[1]{0}', space=sflag, size = 0x4, scoped, tag = 'scoped memory for lstm_forward.1']
    %18 = vsyncpa [#allocation4], 0
    %19 = vsyncpa [#allocation6], 0
    // Predicated region
    $region2: #{lstm_forward.1} parent=1 // pred_check
      _
    $region3: #{lstm_forward.1} parent=1 // pred_check_branch
      %21 = sbr.rel (0) target = $region5
    $region4: #{lstm_forward.1} parent=1 // pred_region
      _
    $region5: #{lstm_forward.1} parent=1 // pred_fallthru
      _
    // Predicated region
    $region6: #{lstm_forward.1} parent=1 // pred_check
      _
    $region7: #{lstm_forward.1} parent=1 // pred_check_branch
      %23 = sbr.rel (0) target = $region9
    $region8: #{lstm_forward.1} parent=1 // pred_region
      _
    $region9: #{lstm_forward.1} parent=1 // pred_fallthru
      _
    // Predicated region
    $region10: #{lstm_forward.1} parent=1 // pred_check
      _
    $region11: #{lstm_forward.1} parent=1 // pred_check_branch
      %25 = sbr.rel (0) target = $region13
    $region12: #{lstm_forward.1} parent=1 // pred_region
      _
    $region13: #{lstm_forward.1} parent=1 // pred_fallthru
      _
    // Predicated region
    $region14: #{lstm_forward.1} parent=1 // pred_check
      _
    $region15: #{lstm_forward.1} parent=1 // pred_check_branch
      %27 = sbr.rel (0) target = $region17
    $region16: #{lstm_forward.1} parent=1 // pred_region
      _
    $region17: #{lstm_forward.1} parent=1 // pred_fallthru
      _
    // Predicated region
    $region18: #{lstm_forward.1} parent=1 // pred_check
      _
    $region19: #{lstm_forward.1} parent=1 // pred_check_branch
      %29 = sbr.rel (0) target = $region21
    $region20: #{lstm_forward.1} parent=1 // pred_region
      _
    $region21: #{lstm_forward.1} parent=1 // pred_fallthru
      _
    // Predicated region
    $region22: #{lstm_forward.1} parent=1 // pred_check
      _
    $region23: #{lstm_forward.1} parent=1 // pred_check_branch
      %31 = sbr.rel (0) target = $region25
    $region24: #{lstm_forward.1} parent=1 // pred_region
      _
    $region25: #{lstm_forward.1} parent=1 // pred_fallthru
      _
    // Predicated region
    $region26: #{lstm_forward.1} parent=1 // pred_check
      _
    $region27: #{lstm_forward.1} parent=1 // pred_check_branch
      %33 = sbr.rel (0) target = $region29
    $region28: #{lstm_forward.1} parent=1 // pred_region
      _
    $region29: #{lstm_forward.1} parent=1 // pred_fallthru
      _
    // Predicated region
    $region30: #{lstm_forward.1} parent=1 // pred_check
      _
    $region31: #{lstm_forward.1} parent=1 // pred_check_branch
      %35 = sbr.rel (0) target = $region33
    $region32: #{lstm_forward.1} parent=1 // pred_region
      _
    $region33: #{lstm_forward.1} parent=1 // pred_fallthru
      _
    %v36 = vld [vmem:[%s1] sm:$0x1]
    %v37 = vld [vmem:[%s2] sm:$0x1]
    %v38 = vld [vmem:[%s4] sm:$0xff]
    %v39 = vld [vmem:[%s4 + $0x8] sm:$0xff]
    %v40 = vld [vmem:[%s4 + $0x10] sm:$0xff]
    %v41 = vld [vmem:[%s4 + $0x18] sm:$0xff]
    %v42 = vld [vmem:[%s0] sm:$0x1]
    %v43 = vld [vmem:[%s0 + $0x1] sm:$0x1]
    %v44 = vld [vmem:[%s0 + $0x2] sm:$0x1]
    %v45 = vld [vmem:[%s0 + $0x3] sm:$0x1]
    %v46 = vld [vmem:[%s0 + $0x4] sm:$0x1]
    %v47 = vld [vmem:[%s0 + $0x5] sm:$0x1]
    %v48 = vld [vmem:[%s0 + $0x6] sm:$0x1]
    %v49 = vld [vmem:[%s0 + $0x7] sm:$0x1]
    %v50 = vld [vmem:[%s3] sm:$0x1]
    %v51 = vld [vmem:[%s5] sm:$0x1]
    %v53 = vperm.slane %v51, 0
    %63 = vst [vmem:[#allocation1] ss:$9 sm:$0xff] %v42
    %s64 = scalar_lea.vmem [#allocation1], 1
    %65 = vst [vmem:[%s64] ss:$9 sm:$0xff] %v43
    %s66 = scalar_lea.vmem [#allocation1], 2
    %67 = vst [vmem:[%s66] ss:$9 sm:$0xff] %v44
    %s68 = scalar_lea.vmem [#allocation1], 3
    %69 = vst [vmem:[%s68] ss:$9 sm:$0xff] %v45
    %s70 = scalar_lea.vmem [#allocation1], 4
    %71 = vst [vmem:[%s70] ss:$9 sm:$0xff] %v46
    %s72 = scalar_lea.vmem [#allocation1], 5
    %73 = vst [vmem:[%s72] ss:$9 sm:$0xff] %v47
    %s74 = scalar_lea.vmem [#allocation1], 6
    %75 = vst [vmem:[%s74] ss:$9 sm:$0xff] %v48
    %s76 = scalar_lea.vmem [#allocation1], 7
    %77 = vst [vmem:[%s76] ss:$9 sm:$0xff] %v49
    %v78 = vld [vmem:[#allocation1] sm:$0xff]
    %vm79 = vcmask 7168
    %v80 = vsel %vm79, %v78, 0
    %vm82 = vcmask 1040384
    %v84 = vsel %vm82, %v50, 0
    %86 = vmatpush.msra.mxu0 0.0
    %87 = vmatpush.msra.mxu0 0.0
    %88 = vmatpush.msra.mxu0 0.0
    %89 = vmatpush.msra.mxu0 0.0
    %90 = vmatpush.msra.mxu0 0.0
    %91 = vmatpush.msra.mxu0 0.0
    %92 = vmatpush.msra.mxu0 0.0
    %93 = vmatpush.msra.mxu0 0.0
    %94 = vmatpush.msra.mxu0 0.0
    %95 = vmatpush.msra.mxu0 0.0
    %96 = vmatpush.msra.mxu0 0.0
    %97 = vmatpush.msra.mxu0 0.0
    %98 = vmatpush.msra.mxu0 0.0
    %99 = vmatpush.msra.mxu0 0.0
    %100 = vmatpush.msra.mxu0 0.0
    %101 = vmatpush.msra.mxu0 %v84
    %102 = vmatmul.f32.gmra.mxu0 %v80
    %v103 = vpop.f32.mrf.mxu0
    %v104 = vadd.f32 %v53, %v103
    %105 = vdwg.mxu0
    %vm106 = vcmask 261120
    %v108 = vsel %vm106, %v36, 0
    %110 = vmatpush.msra.mxu0 0.0
    %111 = vmatpush.msra.mxu0 0.0
    %112 = vmatpush.msra.mxu0 0.0
    %113 = vmatpush.msra.mxu0 0.0
    %114 = vmatpush.msra.mxu0 0.0
    %115 = vmatpush.msra.mxu0 0.0
    %116 = vmatpush.msra.mxu0 0.0
    %117 = vmatpush.msra.mxu0 0.0
    %118 = vmatpush.msra.mxu0 0.0
    %119 = vmatpush.msra.mxu0 0.0
    %120 = vmatpush.msra.mxu0 0.0
    %121 = vmatpush.msra.mxu0 0.0
    %122 = vmatpush.msra.mxu0 %v41
    %123 = vmatpush.msra.mxu0 %v40
    %124 = vmatpush.msra.mxu0 %v39
    %125 = vmatpush.msra.mxu0 %v38
    %126 = vmatmul.f32.gmra.mxu0 %v108
    %v127 = vpop.f32.mrf.mxu0
    %v128 = vadd.f32 0.0, %v127
    %129 = vdwg.mxu0
    %v130 = vadd.f32 %v104, %v128
    %v131 = vxor.u32 %v130, 2147483648
    %v132 = vmul.f32 %v131, 1.442695
    %v133 = vpow.pop %v132
    %v134 = vadd.f32 %v133, 1.0
    %v135 = vrcp.pop %v134
    %v136 = vmul.f32 %v134, %v135
    %v137 = vsub.f32 1.0, %v136
    %v138 = vmul.f32 %v135, %v137
    %v139 = vadd.f32 %v135, %v138
    %vm140 = vweird.f32 %v134
    %vm141 = vweird.f32 %v135
    %vm142 = vmor %vm140, %vm141
    %v143 = vsel %vm142, %v135, %v139
    %v144 = vand.u32 2147483647, %v134
    %vm145 = vcmp.eq.f32.partialorder %v144, 8.507059e+37
    %v146 = vand.u32 %v134, 2147483648
    %v147 = vor.u32 1.1754944e-38, %v146
    %v148 = vsel %vm145, %v147, %v143
    %v149 = vmul.f32 1.0, %v148
    %v150 = vtanh.pop %v130
    %v152 = vperm.slane %v37, 0
    %153 = vrot.lane.b32.xlu0 %v152, 32
    %v154 = vpop.permute.xlu0 %153
    %v156 = vmul.f32 %v149, %v154
    %158 = vrot.lane.b32.xlu0 %v150, 64
    %v159 = vpop.permute.xlu0 %158
    %v161 = vmul.f32 %v149, %v159
    %163 = vrot.lane.b32.xlu0 %v161, 32
    %v164 = vpop.permute.xlu0 %163
    %v166 = vadd.f32 %v156, %v164
    %v167 = vtanh.pop %v166
    %169 = vrot.lane.b32.xlu0 %v167, 64
    %v170 = vpop.permute.xlu0 %169
    %v172 = vmul.f32 %v149, %v170
    %174 = vrot.lane.b32.xlu0 %v172, 32
    %v175 = vpop.permute.xlu0 %174
    %v176 = vsel %vm106, %v175, 0
    %178 = vmatpush.msra.mxu0 0.0
    %179 = vmatpush.msra.mxu0 0.0
    %180 = vmatpush.msra.mxu0 0.0
    %181 = vmatpush.msra.mxu0 0.0
    %182 = vmatpush.msra.mxu0 0.0
    %183 = vmatpush.msra.mxu0 0.0
    %184 = vmatpush.msra.mxu0 0.0
    %185 = vmatpush.msra.mxu0 0.0
    %186 = vmatpush.msra.mxu0 0.0
    %187 = vmatpush.msra.mxu0 0.0
    %188 = vmatpush.msra.mxu0 0.0
    %189 = vmatpush.msra.mxu0 0.0
    %190 = vmatpush.msra.mxu0 %v41
    %191 = vmatpush.msra.mxu0 %v40
    %192 = vmatpush.msra.mxu0 %v39
    %193 = vmatpush.msra.mxu0 %v38
    %194 = vmatmul.f32.gmra.mxu0 %v176
    %v195 = vpop.f32.mrf.mxu0
    %v196 = vadd.f32 0.0, %v195
    %197 = vdwg.mxu0
    %v199 = vrot.slane %v196, 7
    %v201 = vadd.f32 %v104, %v199
    %v202 = vxor.u32 %v201, 2147483648
    %v203 = vmul.f32 %v202, 1.442695
    %v204 = vpow.pop %v203
    %v205 = vadd.f32 %v204, 1.0
    %v206 = vrcp.pop %v205
    %v207 = vmul.f32 %v205, %v206
    %v208 = vsub.f32 1.0, %v207
    %v209 = vmul.f32 %v206, %v208
    %v210 = vadd.f32 %v206, %v209
    %vm211 = vweird.f32 %v205
    %vm212 = vweird.f32 %v206
    %vm213 = vmor %vm211, %vm212
    %v214 = vsel %vm213, %v206, %v210
    %v215 = vand.u32 2147483647, %v205
    %vm216 = vcmp.eq.f32.partialorder %v215, 8.507059e+37
    %v217 = vand.u32 %v205, 2147483648
    %v218 = vor.u32 1.1754944e-38, %v217
    %v219 = vsel %vm216, %v218, %v214
    %v220 = vmul.f32 1.0, %v219
    %v221 = vtanh.pop %v201
    %v223 = vrot.slane %v166, 7
    %v225 = vmul.f32 %v220, %v223
    %227 = vrot.lane.b32.xlu0 %v221, 64
    %v228 = vpop.permute.xlu0 %227
    %v230 = vmul.f32 %v220, %v228
    %232 = vrot.lane.b32.xlu0 %v230, 32
    %v233 = vpop.permute.xlu0 %232
    %v235 = vadd.f32 %v225, %v233
    %v236 = vtanh.pop %v235
    %238 = vrot.lane.b32.xlu0 %v236, 64
    %v239 = vpop.permute.xlu0 %238
    %v241 = vmul.f32 %v220, %v239
    %v243 = vrot.slane %v241, 1
    %244 = vrot.lane.b32.xlu0 %v243, 32
    %v245 = vpop.permute.xlu0 %244
    %v246 = vsel %vm106, %v245, 0
    %248 = vmatpush.msra.mxu0 0.0
    %249 = vmatpush.msra.mxu0 0.0
    %250 = vmatpush.msra.mxu0 0.0
    %251 = vmatpush.msra.mxu0 0.0
    %252 = vmatpush.msra.mxu0 0.0
    %253 = vmatpush.msra.mxu0 0.0
    %254 = vmatpush.msra.mxu0 0.0
    %255 = vmatpush.msra.mxu0 0.0
    %256 = vmatpush.msra.mxu0 0.0
    %257 = vmatpush.msra.mxu0 0.0
    %258 = vmatpush.msra.mxu0 0.0
    %259 = vmatpush.msra.mxu0 0.0
    %260 = vmatpush.msra.mxu0 %v41
    %261 = vmatpush.msra.mxu0 %v40
    %262 = vmatpush.msra.mxu0 %v39
    %263 = vmatpush.msra.mxu0 %v38
    %264 = vmatmul.f32.gmra.mxu0 %v246
    %v265 = vpop.f32.mrf.mxu0
    %v266 = vadd.f32 0.0, %v265
    %267 = vdwg.mxu0
    %v269 = vrot.slane %v266, 6
    %v271 = vadd.f32 %v104, %v269
    %v272 = vxor.u32 %v271, 2147483648
    %v273 = vmul.f32 %v272, 1.442695
    %v274 = vpow.pop %v273
    %v275 = vadd.f32 %v274, 1.0
    %v276 = vrcp.pop %v275
    %v277 = vmul.f32 %v275, %v276
    %v278 = vsub.f32 1.0, %v277
    %v279 = vmul.f32 %v276, %v278
    %v280 = vadd.f32 %v276, %v279
    %vm281 = vweird.f32 %v275
    %vm282 = vweird.f32 %v276
    %vm283 = vmor %vm281, %vm282
    %v284 = vsel %vm283, %v276, %v280
    %v285 = vand.u32 2147483647, %v275
    %vm286 = vcmp.eq.f32.partialorder %v285, 8.507059e+37
    %v287 = vand.u32 %v275, 2147483648
    %v288 = vor.u32 1.1754944e-38, %v287
    %v289 = vsel %vm286, %v288, %v284
    %v290 = vmul.f32 1.0, %v289
    %v291 = vtanh.pop %v271
    %v293 = vrot.slane %v235, 7
    %v295 = vmul.f32 %v290, %v293
    %297 = vrot.lane.b32.xlu0 %v291, 64
    %v298 = vpop.permute.xlu0 %297
    %v300 = vmul.f32 %v290, %v298
    %302 = vrot.lane.b32.xlu0 %v300, 32
    %v303 = vpop.permute.xlu0 %302
    %v305 = vadd.f32 %v295, %v303
    %v306 = vtanh.pop %v305
    %308 = vrot.lane.b32.xlu0 %v306, 64
    %v309 = vpop.permute.xlu0 %308
    %v311 = vmul.f32 %v290, %v309
    %v313 = vrot.slane %v311, 2
    %314 = vrot.lane.b32.xlu0 %v313, 32
    %v315 = vpop.permute.xlu0 %314
    %v316 = vsel %vm106, %v315, 0
    %318 = vmatpush.msra.mxu0 0.0
    %319 = vmatpush.msra.mxu0 0.0
    %320 = vmatpush.msra.mxu0 0.0
    %321 = vmatpush.msra.mxu0 0.0
    %322 = vmatpush.msra.mxu0 0.0
    %323 = vmatpush.msra.mxu0 0.0
    %324 = vmatpush.msra.mxu0 0.0
    %325 = vmatpush.msra.mxu0 0.0
    %326 = vmatpush.msra.mxu0 0.0
    %327 = vmatpush.msra.mxu0 0.0
    %328 = vmatpush.msra.mxu0 0.0
    %329 = vmatpush.msra.mxu0 0.0
    %330 = vmatpush.msra.mxu0 %v41
    %331 = vmatpush.msra.mxu0 %v40
    %332 = vmatpush.msra.mxu0 %v39
    %333 = vmatpush.msra.mxu0 %v38
    %334 = vmatmul.f32.gmra.mxu0 %v316
    %v335 = vpop.f32.mrf.mxu0
    %v336 = vadd.f32 0.0, %v335
    %337 = vdwg.mxu0
    %v339 = vrot.slane %v336, 5
    %v341 = vadd.f32 %v104, %v339
    %v342 = vxor.u32 %v341, 2147483648
    %v343 = vmul.f32 %v342, 1.442695
    %v344 = vpow.pop %v343
    %v345 = vadd.f32 %v344, 1.0
    %v346 = vrcp.pop %v345
    %v347 = vmul.f32 %v345, %v346
    %v348 = vsub.f32 1.0, %v347
    %v349 = vmul.f32 %v346, %v348
    %v350 = vadd.f32 %v346, %v349
    %vm351 = vweird.f32 %v345
    %vm352 = vweird.f32 %v346
    %vm353 = vmor %vm351, %vm352
    %v354 = vsel %vm353, %v346, %v350
    %v355 = vand.u32 2147483647, %v345
    %vm356 = vcmp.eq.f32.partialorder %v355, 8.507059e+37
    %v357 = vand.u32 %v345, 2147483648
    %v358 = vor.u32 1.1754944e-38, %v357
    %v359 = vsel %vm356, %v358, %v354
    %v360 = vmul.f32 1.0, %v359
    %v361 = vtanh.pop %v341
    %v363 = vrot.slane %v305, 7
    %v365 = vmul.f32 %v360, %v363
    %367 = vrot.lane.b32.xlu0 %v361, 64
    %v368 = vpop.permute.xlu0 %367
    %v370 = vmul.f32 %v360, %v368
    %372 = vrot.lane.b32.xlu0 %v370, 32
    %v373 = vpop.permute.xlu0 %372
    %v375 = vadd.f32 %v365, %v373
    %v376 = vtanh.pop %v375
    %378 = vrot.lane.b32.xlu0 %v376, 64
    %v379 = vpop.permute.xlu0 %378
    %v381 = vmul.f32 %v360, %v379
    %v383 = vrot.slane %v381, 3
    %384 = vrot.lane.b32.xlu0 %v383, 32
    %v385 = vpop.permute.xlu0 %384
    %v386 = vsel %vm106, %v385, 0
    %388 = vmatpush.msra.mxu0 0.0
    %389 = vmatpush.msra.mxu0 0.0
    %390 = vmatpush.msra.mxu0 0.0
    %391 = vmatpush.msra.mxu0 0.0
    %392 = vmatpush.msra.mxu0 0.0
    %393 = vmatpush.msra.mxu0 0.0
    %394 = vmatpush.msra.mxu0 0.0
    %395 = vmatpush.msra.mxu0 0.0
    %396 = vmatpush.msra.mxu0 0.0
    %397 = vmatpush.msra.mxu0 0.0
    %398 = vmatpush.msra.mxu0 0.0
    %399 = vmatpush.msra.mxu0 0.0
    %400 = vmatpush.msra.mxu0 %v41
    %401 = vmatpush.msra.mxu0 %v40
    %402 = vmatpush.msra.mxu0 %v39
    %403 = vmatpush.msra.mxu0 %v38
    %404 = vmatmul.f32.gmra.mxu0 %v386
    %v405 = vpop.f32.mrf.mxu0
    %v406 = vadd.f32 0.0, %v405
    %407 = vdwg.mxu0
    %v409 = vrot.slane %v406, 4
    %v411 = vadd.f32 %v104, %v409
    %v412 = vxor.u32 %v411, 2147483648
    %v413 = vmul.f32 %v412, 1.442695
    %v414 = vpow.pop %v413
    %v415 = vadd.f32 %v414, 1.0
    %v416 = vrcp.pop %v415
    %v417 = vmul.f32 %v415, %v416
    %v418 = vsub.f32 1.0, %v417
    %v419 = vmul.f32 %v416, %v418
    %v420 = vadd.f32 %v416, %v419
    %vm421 = vweird.f32 %v415
    %vm422 = vweird.f32 %v416
    %vm423 = vmor %vm421, %vm422
    %v424 = vsel %vm423, %v416, %v420
    %v425 = vand.u32 2147483647, %v415
    %vm426 = vcmp.eq.f32.partialorder %v425, 8.507059e+37
    %v427 = vand.u32 %v415, 2147483648
    %v428 = vor.u32 1.1754944e-38, %v427
    %v429 = vsel %vm426, %v428, %v424
    %v430 = vmul.f32 1.0, %v429
    %v431 = vtanh.pop %v411
    %v433 = vrot.slane %v375, 7
    %v435 = vmul.f32 %v430, %v433
    %437 = vrot.lane.b32.xlu0 %v431, 64
    %v438 = vpop.permute.xlu0 %437
    %v440 = vmul.f32 %v430, %v438
    %442 = vrot.lane.b32.xlu0 %v440, 32
    %v443 = vpop.permute.xlu0 %442
    %v445 = vadd.f32 %v435, %v443
    %v446 = vtanh.pop %v445
    %448 = vrot.lane.b32.xlu0 %v446, 64
    %v449 = vpop.permute.xlu0 %448
    %v451 = vmul.f32 %v430, %v449
    %v453 = vrot.slane %v451, 4
    %454 = vrot.lane.b32.xlu0 %v453, 32
    %v455 = vpop.permute.xlu0 %454
    %v456 = vsel %vm106, %v455, 0
    %458 = vmatpush.msra.mxu0 0.0
    %459 = vmatpush.msra.mxu0 0.0
    %460 = vmatpush.msra.mxu0 0.0
    %461 = vmatpush.msra.mxu0 0.0
    %462 = vmatpush.msra.mxu0 0.0
    %463 = vmatpush.msra.mxu0 0.0
    %464 = vmatpush.msra.mxu0 0.0
    %465 = vmatpush.msra.mxu0 0.0
    %466 = vmatpush.msra.mxu0 0.0
    %467 = vmatpush.msra.mxu0 0.0
    %468 = vmatpush.msra.mxu0 0.0
    %469 = vmatpush.msra.mxu0 0.0
    %470 = vmatpush.msra.mxu0 %v41
    %471 = vmatpush.msra.mxu0 %v40
    %472 = vmatpush.msra.mxu0 %v39
    %473 = vmatpush.msra.mxu0 %v38
    %474 = vmatmul.f32.gmra.mxu0 %v456
    %v475 = vpop.f32.mrf.mxu0
    %v476 = vadd.f32 0.0, %v475
    %477 = vdwg.mxu0
    %v479 = vrot.slane %v476, 3
    %v481 = vadd.f32 %v104, %v479
    %v482 = vxor.u32 %v481, 2147483648
    %v483 = vmul.f32 %v482, 1.442695
    %v484 = vpow.pop %v483
    %v485 = vadd.f32 %v484, 1.0
    %v486 = vrcp.pop %v485
    %v487 = vmul.f32 %v485, %v486
    %v488 = vsub.f32 1.0, %v487
    %v489 = vmul.f32 %v486, %v488
    %v490 = vadd.f32 %v486, %v489
    %vm491 = vweird.f32 %v485
    %vm492 = vweird.f32 %v486
    %vm493 = vmor %vm491, %vm492
    %v494 = vsel %vm493, %v486, %v490
    %v495 = vand.u32 2147483647, %v485
    %vm496 = vcmp.eq.f32.partialorder %v495, 8.507059e+37
    %v497 = vand.u32 %v485, 2147483648
    %v498 = vor.u32 1.1754944e-38, %v497
    %v499 = vsel %vm496, %v498, %v494
    %v500 = vmul.f32 1.0, %v499
    %v501 = vtanh.pop %v481
    %v503 = vrot.slane %v445, 7
    %v505 = vmul.f32 %v500, %v503
    %507 = vrot.lane.b32.xlu0 %v501, 64
    %v508 = vpop.permute.xlu0 %507
    %v510 = vmul.f32 %v500, %v508
    %512 = vrot.lane.b32.xlu0 %v510, 32
    %v513 = vpop.permute.xlu0 %512
    %v515 = vadd.f32 %v505, %v513
    %v516 = vtanh.pop %v515
    %518 = vrot.lane.b32.xlu0 %v516, 64
    %v519 = vpop.permute.xlu0 %518
    %v521 = vmul.f32 %v500, %v519
    %v523 = vrot.slane %v521, 5
    %524 = vrot.lane.b32.xlu0 %v523, 32
    %v525 = vpop.permute.xlu0 %524
    %v526 = vsel %vm106, %v525, 0
    %528 = vmatpush.msra.mxu0 0.0
    %529 = vmatpush.msra.mxu0 0.0
    %530 = vmatpush.msra.mxu0 0.0
    %531 = vmatpush.msra.mxu0 0.0
    %532 = vmatpush.msra.mxu0 0.0
    %533 = vmatpush.msra.mxu0 0.0
    %534 = vmatpush.msra.mxu0 0.0
    %535 = vmatpush.msra.mxu0 0.0
    %536 = vmatpush.msra.mxu0 0.0
    %537 = vmatpush.msra.mxu0 0.0
    %538 = vmatpush.msra.mxu0 0.0
    %539 = vmatpush.msra.mxu0 0.0
    %540 = vmatpush.msra.mxu0 %v41
    %541 = vmatpush.msra.mxu0 %v40
    %542 = vmatpush.msra.mxu0 %v39
    %543 = vmatpush.msra.mxu0 %v38
    %544 = vmatmul.f32.gmra.mxu0 %v526
    %v545 = vpop.f32.mrf.mxu0
    %v546 = vadd.f32 0.0, %v545
    %547 = vdwg.mxu0
    %v549 = vrot.slane %v546, 2
    %v551 = vadd.f32 %v104, %v549
    %v552 = vxor.u32 %v551, 2147483648
    %v553 = vmul.f32 %v552, 1.442695
    %v554 = vpow.pop %v553
    %v555 = vadd.f32 %v554, 1.0
    %v556 = vrcp.pop %v555
    %v557 = vmul.f32 %v555, %v556
    %v558 = vsub.f32 1.0, %v557
    %v559 = vmul.f32 %v556, %v558
    %v560 = vadd.f32 %v556, %v559
    %vm561 = vweird.f32 %v555
    %vm562 = vweird.f32 %v556
    %vm563 = vmor %vm561, %vm562
    %v564 = vsel %vm563, %v556, %v560
    %v565 = vand.u32 2147483647, %v555
    %vm566 = vcmp.eq.f32.partialorder %v565, 8.507059e+37
    %v567 = vand.u32 %v555, 2147483648
    %v568 = vor.u32 1.1754944e-38, %v567
    %v569 = vsel %vm566, %v568, %v564
    %v570 = vmul.f32 1.0, %v569
    %v571 = vtanh.pop %v551
    %v573 = vrot.slane %v515, 7
    %v575 = vmul.f32 %v570, %v573
    %577 = vrot.lane.b32.xlu0 %v571, 64
    %v578 = vpop.permute.xlu0 %577
    %v580 = vmul.f32 %v570, %v578
    %582 = vrot.lane.b32.xlu0 %v580, 32
    %v583 = vpop.permute.xlu0 %582
    %v585 = vadd.f32 %v575, %v583
    %v586 = vtanh.pop %v585
    %588 = vrot.lane.b32.xlu0 %v586, 64
    %v589 = vpop.permute.xlu0 %588
    %v591 = vmul.f32 %v570, %v589
    %v593 = vrot.slane %v591, 6
    %594 = vrot.lane.b32.xlu0 %v593, 32
    %v595 = vpop.permute.xlu0 %594
    %v596 = vsel %vm106, %v595, 0
    %598 = vmatpush.msra.mxu0 0.0
    %599 = vmatpush.msra.mxu0 0.0
    %600 = vmatpush.msra.mxu0 0.0
    %601 = vmatpush.msra.mxu0 0.0
    %602 = vmatpush.msra.mxu0 0.0
    %603 = vmatpush.msra.mxu0 0.0
    %604 = vmatpush.msra.mxu0 0.0
    %605 = vmatpush.msra.mxu0 0.0
    %606 = vmatpush.msra.mxu0 0.0
    %607 = vmatpush.msra.mxu0 0.0
    %608 = vmatpush.msra.mxu0 0.0
    %609 = vmatpush.msra.mxu0 0.0
    %610 = vmatpush.msra.mxu0 %v41
    %611 = vmatpush.msra.mxu0 %v40
    %612 = vmatpush.msra.mxu0 %v39
    %613 = vmatpush.msra.mxu0 %v38
    %614 = vmatmul.f32.gmra.mxu0 %v596
    %v615 = vpop.f32.mrf.mxu0
    %v616 = vadd.f32 0.0, %v615
    %617 = vdwg.mxu0
    %v619 = vrot.slane %v616, 1
    %v621 = vadd.f32 %v104, %v619
    %v622 = vxor.u32 %v621, 2147483648
    %v623 = vmul.f32 %v622, 1.442695
    %v624 = vpow.pop %v623
    %v625 = vadd.f32 %v624, 1.0
    %v626 = vrcp.pop %v625
    %v627 = vmul.f32 %v625, %v626
    %v628 = vsub.f32 1.0, %v627
    %v629 = vmul.f32 %v626, %v628
    %v630 = vadd.f32 %v626, %v629
    %vm631 = vweird.f32 %v625
    %vm632 = vweird.f32 %v626
    %vm633 = vmor %vm631, %vm632
    %v634 = vsel %vm633, %v626, %v630
    %v635 = vand.u32 2147483647, %v625
    %vm636 = vcmp.eq.f32.partialorder %v635, 8.507059e+37
    %v637 = vand.u32 %v625, 2147483648
    %v638 = vor.u32 1.1754944e-38, %v637
    %v639 = vsel %vm636, %v638, %v634
    %v640 = vmul.f32 1.0, %v639
    %v641 = vtanh.pop %v621
    %v643 = vrot.slane %v585, 7
    %v645 = vmul.f32 %v640, %v643
    %647 = vrot.lane.b32.xlu0 %v641, 64
    %v648 = vpop.permute.xlu0 %647
    %v650 = vmul.f32 %v640, %v648
    %652 = vrot.lane.b32.xlu0 %v650, 32
    %v653 = vpop.permute.xlu0 %652
    %v655 = vadd.f32 %v645, %v653
    %v656 = vtanh.pop %v655
    %658 = vrot.lane.b32.xlu0 %v656, 64
    %v659 = vpop.permute.xlu0 %658
    %v661 = vmul.f32 %v640, %v659
    %v662 = vsel %vm82, %v172, %v241
    %vm663 = vcmask 1041408
    %v664 = vsel %vm663, %v662, %v311
    %vm665 = vcmask 1042432
    %v666 = vsel %vm665, %v664, %v381
    %vm667 = vcmask 1043456
    %v668 = vsel %vm667, %v666, %v451
    %vm669 = vcmask 1044480
    %v670 = vsel %vm669, %v668, %v521
    %vm671 = vcmask 1045504
    %v672 = vsel %vm671, %v670, %v591
    %vm673 = vcmask 1046528
    %v674 = vsel %vm673, %v672, %v661
    %v675 = vld [vmem:[%s6] sm:$0x1]
    %v677 = vperm.slane %v675, 0
    %678 = vrot.lane.b32.xlu0 %v677, 96
    %v679 = vpop.permute.xlu0 %678
    %v681 = vmul.f32 %v674, %v679
    %683 = vrot.lane.b32.xlu0 %v681, 32
    %v684 = vpop.permute.xlu0 %683
    %v686 = vsel %vm106, %v684, 0.0
    %687 = vadd.xlane.f32.xlu0 %v686
    %v688 = vpop.xlane.xlu0 %687
    %v689 = vld [vmem:[#allocation2] sm:$0x1]
    %v691 = vperm.slane %v689, 0
    %v693 = vadd.f32 %v688, %v691
    %694 = vst.msk [vmem:[%s8] sm:$0xff] %vm79, %v693
    %696 = vrot.lane.b32.xlu0 %v661, 32
    %v697 = vpop.permute.xlu0 %696
    %vm699 = vcmask 261127
    %700 = vst.msk [vmem:[#allocation3 - $0x7] sm:$0x80] %vm699, %v697
    %702 = vrot.lane.b32.xlu0 %v655, 96
    %v703 = vpop.permute.xlu0 %702
    %705 = vst.msk [vmem:[#allocation5 - $0x7] sm:$0x80] %vm699, %v703
    // Predicated region
    $region34: #{lstm_forward.1} parent=1 // pred_check
      _
    $region35: #{lstm_forward.1} parent=1 // pred_check_branch
      %707 = sbr.rel (0) target = $region37
    $region36: #{lstm_forward.1} parent=1 // pred_region
      _
    $region37: #{lstm_forward.1} parent=1 // pred_fallthru
      _
    // Predicated region
    $region38: #{lstm_forward.1} parent=1 // pred_check
      _
    $region39: #{lstm_forward.1} parent=1 // pred_check_branch
      %709 = sbr.rel (0) target = $region41
    $region40: #{lstm_forward.1} parent=1 // pred_region
      %711 = vsyncadd [#allocation4], 0
      %s713 = sshll.u32 [#allocation3], 4
      %s714 = int_to_ptr.vmem [resolvable:$true] %s713
      %s715 = sshll.u32 %s9, 4
      %s716 = int_to_ptr.hbm [resolvable:$true] %s715
      %718 = dma.vmem_to_hbm [thread:$0]  %s714, 16, %s716, [#allocation4]
    $region41: #{lstm_forward.1} parent=1 // pred_fallthru
      _
    // Predicated region
    $region42: #{lstm_forward.1} parent=1 // pred_check
      _
    $region43: #{lstm_forward.1} parent=1 // pred_check_branch
      %720 = sbr.rel (0) target = $region45
    $region44: #{lstm_forward.1} parent=1 // pred_region
      %722 = vsyncadd [#allocation6], 0
      %s724 = sshll.u32 [#allocation5], 4
      %s725 = int_to_ptr.vmem [resolvable:$true] %s724
      %s726 = sshll.u32 %s10, 4
      %s727 = int_to_ptr.hbm [resolvable:$true] %s726
      %729 = dma.vmem_to_hbm [thread:$0]  %s725, 16, %s727, [#allocation6]
    $region45: #{lstm_forward.1} parent=1 // pred_fallthru
      _
    // Predicated region
    $region46: #{lstm_forward.1} parent=1 // pred_check
      _
    $region47: #{lstm_forward.1} parent=1 // pred_check_branch
      %731 = sbr.rel (0) target = $region49
    $region48: #{lstm_forward.1} parent=1 // pred_region
      _
    $region49: #{lstm_forward.1} parent=1 // pred_fallthru
      _
    // Predicated region
    $region50: #{lstm_forward.1} parent=1 // pred_check
      _
    $region51: #{lstm_forward.1} parent=1 // pred_check_branch
      %733 = sbr.rel (0) target = $region53
    $region52: #{lstm_forward.1} parent=1 // pred_region
      %735 = dma.done [#allocation4], 16
    $region53: #{lstm_forward.1} parent=1 // pred_fallthru
      _
    // Predicated region
    $region54: #{lstm_forward.1} parent=1 // pred_check
      _
    $region55: #{lstm_forward.1} parent=1 // pred_check_branch
      %737 = sbr.rel (0) target = $region57
    $region56: #{lstm_forward.1} parent=1 // pred_region
      %739 = dma.done [#allocation6], 16
    $region57: #{lstm_forward.1} parent=1 // pred_fallthru
      _
    %740 = vsyncpa [#allocation4], 1
    %741 = vsyncpa [#allocation6], 1

</llo_original>
